<compile_context>
chip_gen: v7x
topology: tpu7x:2x2x1
jax: 0.10.0
libtpu: 0.0.40
codegen_flags: <defaults>
</compile_context>

<pallas_src>
import functools

import jax
import jax.numpy as jnp
from jax.experimental import pallas as pl
from jax.experimental.pallas import tpu as pltpu

EMBED_DIMENSION = 300
EMBED_MAX_NORM = 1.0
_RENORM_EPS = 1e-7  # matches torch.embedding_renorm_


def _round_up(x, m):
    return ((x + m - 1) // m) * m


def skipgram_kernel(x_ref, w_ref, b_ref, o_ref):
    # x_ref: (TM, D)  bf16 renormed embedding rows for this batch tile
    # w_ref: (D, TN)  bf16 W^T slab (pre-transposed once at init)
    # b_ref: (1, TN)  f32 bias slab
    # o_ref: (TM, TN) f32 logits tile
    acc = jnp.dot(x_ref[...], w_ref[...], preferred_element_type=jnp.float32)
    o_ref[...] = acc + b_ref[...]


def prepare_linear_params(linear_w, linear_b, *, tn=2048):
    """One-time prep: W -> W^T (D, Vp) bf16, bias -> (1, Vp) f32.

    Done once at model init so the pad/transpose/cast cost is never paid per call.
    """
    V, D = linear_w.shape
    TN = min(tn, _round_up(V, 128))
    Vp = _round_up(V, TN)
    wT = jnp.zeros((D, Vp), jnp.bfloat16).at[:, :V].set(
        jnp.asarray(linear_w).T.astype(jnp.bfloat16))
    b = jnp.zeros((1, Vp), jnp.float32).at[0, :V].set(jnp.asarray(linear_b))
    return wT, b


@functools.partial(jax.jit, static_argnames=("tm", "tn"))
def skipgram_forward(ids, emb_table, wT_pad, bias_pad, *, tm=256, tn=2048):
    """ids: (B,) int; emb_table: (V, D) f32; wT_pad: (D, Vp) bf16; bias_pad: (1, Vp) f32.

    Returns padded logits (Bp, Vp) f32 — mask / slice the padding downstream.
    """
    B = ids.shape[0]
    D, Vp = wT_pad.shape

    # Gather + max_norm renorm once, in f32 (hoisted out of the grid loop),
    # then cast the streamed activation to bf16.
    e = emb_table[ids.astype(jnp.int32)]                          # (B, D) f32
    norm = jnp.sqrt(jnp.sum(e * e, axis=-1, keepdims=True))
    scale = jnp.where(norm > EMBED_MAX_NORM,
                      EMBED_MAX_NORM / (norm + _RENORM_EPS),
                      jnp.ones_like(norm))
    x = (e * scale).astype(jnp.bfloat16)                          # (B, D) bf16

    TM = min(tm, _round_up(B, 8))
    TN = min(tn, Vp)
    Bp = _round_up(B, TM)
    if Bp != B:
        x = jnp.zeros((Bp, D), jnp.bfloat16).at[:B].set(x)        # tiny O(B*D) pad

    # Grid: V tiles outermost, batch tiles innermost -> each (D, TN) weight slab
    # is fetched from HBM exactly once and reused across every batch tile.
    grid = (Vp // TN, Bp // TM)

    out_pad = pl.pallas_call(
        skipgram_kernel,
        out_shape=jax.ShapeDtypeStruct((Bp, Vp), jnp.float32),
        grid=grid,
        in_specs=[
            pl.BlockSpec((TM, D), lambda j, i: (i, 0)),   # activations: batch axis only
            pl.BlockSpec((D, TN), lambda j, i: (0, j)),   # W^T slab: V axis only
            pl.BlockSpec((1, TN), lambda j, i: (0, j)),   # bias slab
        ],
        out_specs=pl.BlockSpec((TM, TN), lambda j, i: (i, j)),
        compiler_params=pltpu.CompilerParams(
            dimension_semantics=("parallel", "parallel")),
    )(x, wT_pad, bias_pad)

    return out_pad


def reference_forward(ids, emb_table, linear_w, linear_b):
    """Pure-JAX (f32) reference mirroring the PyTorch module."""
    e = emb_table[ids]                                            # (B, D)
    norm = jnp.linalg.norm(e, axis=-1, keepdims=True)
    scale = jnp.where(norm > EMBED_MAX_NORM,
                      EMBED_MAX_NORM / (norm + _RENORM_EPS), 1.0)
    x = e * scale
    return x @ linear_w.T + linear_b                              # (B, V)


if __name__ == "__main__":
    VOCAB_SIZE = 32
    BATCH = 8

    key = jax.random.PRNGKey(0)
    k_emb, k_w, k_b, k_ids = jax.random.split(key, 4)

    # nn.Embedding default init: N(0, 1) -> norms >> 1, so the max_norm path triggers.
    emb_table = jax.random.normal(k_emb, (VOCAB_SIZE, EMBED_DIMENSION), jnp.float32)
    # nn.Linear default init: U(-1/sqrt(in), 1/sqrt(in)).
    bound = 1.0 / jnp.sqrt(jnp.float32(EMBED_DIMENSION))
    linear_w = jax.random.uniform(k_w, (VOCAB_SIZE, EMBED_DIMENSION), jnp.float32,
                                  minval=-bound, maxval=bound)
    linear_b = jax.random.uniform(k_b, (VOCAB_SIZE,), jnp.float32,
                                  minval=-bound, maxval=bound)

    ids = jax.random.randint(k_ids, (BATCH,), 0, VOCAB_SIZE, dtype=jnp.int32)

    # One-time parameter prep (persistent padded/transposed bf16 weight).
    wT_pad, bias_pad = prepare_linear_params(linear_w, linear_b, tn=2048)

    out_pad = skipgram_forward(ids, emb_table, wT_pad, bias_pad, tm=256, tn=2048)
    out_pad = jax.block_until_ready(out_pad)

    # Slice padding only for the correctness check (downstream code should mask).
    out = out_pad[:BATCH, :VOCAB_SIZE]

    ref = reference_forward(ids, emb_table, linear_w, linear_b)
    assert out.shape == (BATCH, VOCAB_SIZE)
    # bf16 streamed operands, f32 accumulation -> slightly looser tolerance.
    assert jnp.allclose(out, ref, atol=5e-3, rtol=5e-3), "mismatch vs reference"

    # TODO(synk): torch's max_norm also renorms the embedding table in place as a
    # side effect; not reproduced here (irrelevant for forward-only logits).
    print("KERNEL_OK")
</pallas_src>

<mosaic_0001>
module attributes {stable_mosaic.version = 11 : i64} {
  func.func @skipgram_kernel(%arg0: i32, %arg1: i32, %arg2: memref<8x300xbf16, #tpu.memory_space<vmem>>, %arg3: memref<300x128xbf16, #tpu.memory_space<vmem>>, %arg4: memref<1x128xf32, #tpu.memory_space<vmem>>, %arg5: memref<8x128xf32, #tpu.memory_space<vmem>>) attributes {dimension_semantics = [#tpu.dimension_semantics<parallel>, #tpu.dimension_semantics<parallel>], iteration_bounds = array<i64: 1, 1>, scalar_prefetch = 0 : i64, scratch_operands = 0 : i64, tpu.core_type = #tpu.core_type<tc>, window_params = [{transform_indices = @transform_0, window_bounds = array<i64: 8, 300>}, {transform_indices = @transform_1, window_bounds = array<i64: 300, 128>}, {transform_indices = @transform_2, window_bounds = array<i64: 1, 128>}, {transform_indices = @transform_3, window_bounds = array<i64: 8, 128>}]} {
    %c0 = arith.constant 0 : index
    %c0_0 = arith.constant 0 : index
    %0 = vector.load %arg2[%c0, %c0_0] : memref<8x300xbf16, #tpu.memory_space<vmem>>, vector<8x300xbf16>
    %c0_1 = arith.constant 0 : index
    %c0_2 = arith.constant 0 : index
    %1 = vector.load %arg3[%c0_1, %c0_2] : memref<300x128xbf16, #tpu.memory_space<vmem>>, vector<300x128xbf16>
    %cst = arith.constant dense<0.000000e+00> : vector<8x128xf32>
    %2 = tpu.matmul %0, %1, %cst {dimension_numbers = #tpu.dot_dimension_numbers<[1], [0], [0], [1], [0, 0, 1, 1], [], []>} : vector<8x300xbf16>, vector<300x128xbf16>, vector<8x128xf32> -> vector<8x128xf32>
    %c0_3 = arith.constant 0 : index
    %c0_4 = arith.constant 0 : index
    %3 = vector.load %arg4[%c0_3, %c0_4] : memref<1x128xf32, #tpu.memory_space<vmem>>, vector<1x128xf32>
    %4 = vector.broadcast %3 : vector<1x128xf32> to vector<8x128xf32>
    %5 = arith.addf %2, %4 : vector<8x128xf32>
    %c0_5 = arith.constant 0 : index
    %c0_6 = arith.constant 0 : index
    %6 = vector.load %arg5[%c0_5, %c0_6] : memref<8x128xf32, #tpu.memory_space<vmem>>, vector<8x128xf32>
    tpu.vector_store %arg5[%c0_5, %c0_6], %5 {strides = array<i32>} : memref<8x128xf32, #tpu.memory_space<vmem>>, vector<8x128xf32>,
    return
  }
  func.func @transform_0(%arg0: i32, %arg1: i32) -> (i32, i32) {
    %c0_i32 = arith.constant 0 : i32
    %c0_i32_0 = arith.constant 0 : i32
    return %arg1, %c0_i32 : i32, i32
  }
  func.func @transform_1(%arg0: i32, %arg1: i32) -> (i32, i32) {
    %c0_i32 = arith.constant 0 : i32
    %c0_i32_0 = arith.constant 0 : i32
    return %c0_i32, %arg0 : i32, i32
  }
  func.func @transform_2(%arg0: i32, %arg1: i32) -> (i32, i32) {
    %c0_i32 = arith.constant 0 : i32
    %c0_i32_0 = arith.constant 0 : i32
    return %c0_i32, %arg0 : i32, i32
  }
  func.func @transform_3(%arg0: i32, %arg1: i32) -> (i32, i32) {
    %c0_i32 = arith.constant 0 : i32
    return %arg1, %arg0 : i32, i32
  }
}

</mosaic_0001>

<llo_original>
// kernel: skipgram_forward.1
$region0: #{skipgram_forward.1}
  #allocation0 [shape = 'u32[]', space=smem, size = 0x4, offset = 0x4, fixed_abs, tag = 'smem constant byte address 0x4 - core index']
  #allocation1 [shape = 'u32[144,128]{1,0:T(1,128)}', space=vmem, size = 0x12000, scoped, tag = 'internal scratch']
  %s0 = inlined_call_operand.vmem [shape: bf16[8,300], index: 0, kind: input, shape index: {}]
  %s1 = inlined_call_operand.vmem [shape: bf16[300,128], index: 1, kind: input, shape index: {}]
  %s2 = inlined_call_operand.vmem [shape: f32[1,128], index: 2, kind: input, shape index: {}]
  %s3 = inlined_call_operand.hbm [shape: f32[8,128], index: 3, kind: output, shape index: {}]
  %s4 = sld [smem:[#allocation0]]
  $region22: #{skipgram_forward.1} parent=0
    _
  %s6 = ssub.s32 1, %s4
  %s7 = scalar_select 0, %s6, %s4
  $region1: #{skipgram_forward.1} parent=0
    #allocation2 [shape = 'u8[4096]{0}', space=vmem, size = 0x1000, scoped, tag = 'output window, operand 0, single buffered']
    #allocation3 [shape = 's32[1]{0}', space=sflag, size = 0x4, scoped, tag = 'scoped memory for skipgram_forward.1']
    %8 = vsyncpa [#allocation3], 0
    // Predicated region
    $region2: #{skipgram_forward.1} parent=1 // pred_check
      _
    $region3: #{skipgram_forward.1} parent=1 // pred_check_branch
      %10 = sbr.rel (0) target = $region5
    $region4: #{skipgram_forward.1} parent=1 // pred_region
      _
    $region5: #{skipgram_forward.1} parent=1 // pred_fallthru
      _
    // Predicated region
    $region6: #{skipgram_forward.1} parent=1 // pred_check
      _
    $region7: #{skipgram_forward.1} parent=1 // pred_check_branch
      %12 = sbr.rel (0) target = $region9
    $region8: #{skipgram_forward.1} parent=1 // pred_region
      _
    $region9: #{skipgram_forward.1} parent=1 // pred_fallthru
      _
    // Predicated region
    $region10: #{skipgram_forward.1} parent=1 // pred_check
      _
    $region11: #{skipgram_forward.1} parent=1 // pred_check_branch
      %14 = sbr.rel (0) target = $region13
    $region12: #{skipgram_forward.1} parent=1 // pred_region
      _
    $region13: #{skipgram_forward.1} parent=1 // pred_fallthru
      _
    %v16 = vld [vmem:[%s0] sm:$0xff]
    %v17 = vld [vmem:[%s0 + $0x8] sm:$0xf]
    %v18 = vld [vmem:[%s1] sm:$0xf]
    %v19 = vld [vmem:[%s1 + $0x4] sm:$0xf]
    %v20 = vld [vmem:[%s1 + $0x8] sm:$0xf]
    %v21 = vld [vmem:[%s1 + $0xc] sm:$0xf]
    %v22 = vld [vmem:[%s1 + $0x10] sm:$0xf]
    %v23 = vld [vmem:[%s1 + $0x14] sm:$0xf]
    %v24 = vld [vmem:[%s1 + $0x18] sm:$0xf]
    %v25 = vld [vmem:[%s1 + $0x1c] sm:$0xf]
    %v26 = vld [vmem:[%s1 + $0x20] sm:$0xf]
    %v27 = vld [vmem:[%s1 + $0x24] sm:$0xf]
    %v28 = vld [vmem:[%s1 + $0x28] sm:$0xf]
    %v29 = vld [vmem:[%s1 + $0x2c] sm:$0xf]
    %v30 = vld [vmem:[%s1 + $0x30] sm:$0xf]
    %v31 = vld [vmem:[%s1 + $0x34] sm:$0xf]
    %v32 = vld [vmem:[%s1 + $0x38] sm:$0xf]
    %v33 = vld [vmem:[%s1 + $0x3c] sm:$0xf]
    %v34 = vld [vmem:[%s1 + $0x40] sm:$0xf]
    %v35 = vld [vmem:[%s1 + $0x44] sm:$0xf]
    %v36 = vld [vmem:[%s1 + $0x48] sm:$0xf]
    %v37 = vld [vmem:[%s1 + $0x4c] sm:$0xf]
    %v38 = vld [vmem:[%s1 + $0x50] sm:$0xf]
    %v39 = vld [vmem:[%s1 + $0x54] sm:$0xf]
    %v40 = vld [vmem:[%s1 + $0x58] sm:$0xf]
    %v41 = vld [vmem:[%s1 + $0x5c] sm:$0xf]
    %v42 = vld [vmem:[%s1 + $0x60] sm:$0xf]
    %v43 = vld [vmem:[%s1 + $0x64] sm:$0xf]
    %v44 = vld [vmem:[%s1 + $0x68] sm:$0xf]
    %v45 = vld [vmem:[%s1 + $0x6c] sm:$0xf]
    %v46 = vld [vmem:[%s1 + $0x70] sm:$0xf]
    %v47 = vld [vmem:[%s1 + $0x74] sm:$0xf]
    %v48 = vld [vmem:[%s1 + $0x78] sm:$0xf]
    %v49 = vld [vmem:[%s1 + $0x7c] sm:$0xf]
    %v50 = vld [vmem:[%s1 + $0x80] sm:$0xf]
    %v51 = vld [vmem:[%s1 + $0x84] sm:$0xf]
    %v52 = vld [vmem:[%s1 + $0x88] sm:$0xf]
    %v53 = vld [vmem:[%s1 + $0x8c] sm:$0xf]
    %v54 = vld [vmem:[%s1 + $0x90] sm:$0xf]
    %v55 = vld [vmem:[%s1 + $0x94] sm:$0x3]
    %v56 = vld [vmem:[%s2] sm:$0x1]
    %v58 = vlaneseq
    %v59 = vshrl.u32 %v58, 7
    %v60 = vsub.s32 0, %v59
    %v61 = vrot.slane %v56, %v60
    %v65 = vunpack.c.l.b16 %v16
    %v66 = vunpack.c.h.b16 %v16
    %v67 = vunpack.c.l.b16 %v17
    %v68 = vpack.c.b16 %v65, %v65
    %v69 = vpack.c.b16 %v66, %v66
    %v70 = vpack.c.b16 %v67, %v67
    %v111 = vunpack.c.l.b16 %v18
    %v112 = vunpack.c.l.b16 %v19
    %v113 = vunpack.c.l.b16 %v20
    %v114 = vunpack.c.l.b16 %v21
    %v115 = vunpack.c.l.b16 %v22
    %v116 = vunpack.c.l.b16 %v23
    %v117 = vunpack.c.l.b16 %v24
    %v118 = vunpack.c.l.b16 %v25
    %v119 = vunpack.c.l.b16 %v26
    %v120 = vunpack.c.l.b16 %v27
    %v121 = vunpack.c.l.b16 %v28
    %v122 = vunpack.c.l.b16 %v29
    %v123 = vunpack.c.l.b16 %v30
    %v124 = vunpack.c.l.b16 %v31
    %v125 = vunpack.c.l.b16 %v32
    %v126 = vunpack.c.l.b16 %v33
    %v127 = vunpack.c.l.b16 %v34
    %v128 = vunpack.c.l.b16 %v35
    %v129 = vunpack.c.l.b16 %v36
    %v130 = vunpack.c.l.b16 %v37
    %v131 = vunpack.c.l.b16 %v38
    %v132 = vunpack.c.l.b16 %v39
    %v133 = vunpack.c.l.b16 %v40
    %v134 = vunpack.c.l.b16 %v41
    %v135 = vunpack.c.l.b16 %v42
    %v136 = vunpack.c.l.b16 %v43
    %v137 = vunpack.c.l.b16 %v44
    %v138 = vunpack.c.l.b16 %v45
    %v139 = vunpack.c.l.b16 %v46
    %v140 = vunpack.c.l.b16 %v47
    %v141 = vunpack.c.l.b16 %v48
    %v142 = vunpack.c.l.b16 %v49
    %v143 = vunpack.c.l.b16 %v50
    %v144 = vunpack.c.l.b16 %v51
    %v145 = vunpack.c.l.b16 %v52
    %v146 = vunpack.c.l.b16 %v53
    %v147 = vunpack.c.l.b16 %v54
    %v148 = vunpack.c.l.b16 %v55
    %v149 = vpack.c.b16 %v112, %v111
    %v150 = vpack.c.b16 %v114, %v113
    %v151 = vpack.c.b16 %v116, %v115
    %v152 = vpack.c.b16 %v118, %v117
    %v153 = vpack.c.b16 %v120, %v119
    %v154 = vpack.c.b16 %v122, %v121
    %v155 = vpack.c.b16 %v124, %v123
    %v156 = vpack.c.b16 %v126, %v125
    %v157 = vpack.c.b16 %v128, %v127
    %v158 = vpack.c.b16 %v130, %v129
    %v159 = vpack.c.b16 %v132, %v131
    %v160 = vpack.c.b16 %v134, %v133
    %v161 = vpack.c.b16 %v136, %v135
    %v162 = vpack.c.b16 %v138, %v137
    %v163 = vpack.c.b16 %v140, %v139
    %v164 = vpack.c.b16 %v142, %v141
    %v165 = vpack.c.b16 %v144, %v143
    %v166 = vpack.c.b16 %v146, %v145
    %v167 = vpack.c.b16 %v148, %v147
    %vm186 = vcmask 359424
    %v188 = vsel %vm186, %v70, 0
    %vm190 = vcmask 1045504
    %v192 = vsel %vm190, %v167, 0
    %194 = vmatprep.subr.bf16.mxu0 0
    %195 = vmatpush1.bf16.msra.mxu0 %v149
    %196 = vmatprep.subr.bf16.mxu0 0
    %197 = vmatpush1.bf16.msra.mxu0 %v150
    %198 = vmatprep.subr.bf16.mxu0 0
    %199 = vmatpush1.bf16.msra.mxu0 %v151
    %200 = vmatprep.subr.bf16.mxu0 0
    %201 = vmatpush1.bf16.msra.mxu0 %v152
    %202 = vmatprep.subr.bf16.mxu0 0
    %203 = vmatpush1.bf16.msra.mxu0 %v153
    %204 = vmatprep.subr.bf16.mxu0 0
    %205 = vmatpush1.bf16.msra.mxu0 %v154
    %206 = vmatprep.subr.bf16.mxu0 0
    %207 = vmatpush1.bf16.msra.mxu0 %v155
    %208 = vmatprep.subr.bf16.mxu0 0
    %209 = vmatpush1.bf16.msra.mxu0 %v156
    %210 = vmatprep.subr.bf16.mxu0 0
    %211 = vmatpush1.bf16.msra.mxu0 %v157
    %212 = vmatprep.subr.bf16.mxu0 0
    %213 = vmatpush1.bf16.msra.mxu0 %v158
    %214 = vmatprep.subr.bf16.mxu0 0
    %215 = vmatpush1.bf16.msra.mxu0 %v159
    %216 = vmatprep.subr.bf16.mxu0 0
    %217 = vmatpush1.bf16.msra.mxu0 %v160
    %218 = vmatprep.subr.bf16.mxu0 0
    %219 = vmatpush1.bf16.msra.mxu0 %v161
    %220 = vmatprep.subr.bf16.mxu0 0
    %221 = vmatpush1.bf16.msra.mxu0 %v162
    %222 = vmatprep.subr.bf16.mxu0 0
    %223 = vmatpush1.bf16.msra.mxu0 %v163
    %224 = vmatprep.subr.bf16.mxu0 0
    %225 = vmatpush1.bf16.msra.mxu0 %v164
    %226 = vmatprep.mubr.bf16.mxu0 %v69
    %227 = vmatmul.mubr.bf16.gmra.mrb[0].mxu0 %v68
    %v228 = vpop.f32.mrb[0].mxu0
    %v229 = vadd.f32 %v61, %v228
    %v230 = vpop.f32.mrb[0].mxu0
    %v231 = vpop.f32.mrb[0].mxu0
    %v232 = vpop.f32.mrb[0].mxu0
    %233 = vdwg.mxu0
    %234 = vmatprep.subr.bf16.mxu0 0
    %235 = vmatpush1.bf16.msra.mxu0 %v165
    %236 = vmatprep.subr.bf16.mxu0 0
    %237 = vmatpush1.bf16.msra.mxu0 %v166
    %238 = vmatprep.subr.bf16.mxu0 0
    %239 = vmatpush1.bf16.msra.mxu0 %v192
    %240 = vmatprep.subr.bf16.mxu0 0
    %241 = vmatpush1.bf16.msra.mxu0 0
    %242 = vmatprep.subr.bf16.mxu0 0
    %243 = vmatpush1.bf16.msra.mxu0 0
    %244 = vmatprep.subr.bf16.mxu0 0
    %245 = vmatpush1.bf16.msra.mxu0 0
    %246 = vmatprep.subr.bf16.mxu0 0
    %247 = vmatpush1.bf16.msra.mxu0 0
    %248 = vmatprep.subr.bf16.mxu0 0
    %249 = vmatpush1.bf16.msra.mxu0 0
    %250 = vmatprep.subr.bf16.mxu0 0
    %251 = vmatpush1.bf16.msra.mxu0 0
    %252 = vmatprep.subr.bf16.mxu0 0
    %253 = vmatpush1.bf16.msra.mxu0 0
    %254 = vmatprep.subr.bf16.mxu0 0
    %255 = vmatpush1.bf16.msra.mxu0 0
    %256 = vmatprep.subr.bf16.mxu0 0
    %257 = vmatpush1.bf16.msra.mxu0 0
    %258 = vmatprep.subr.bf16.mxu0 0
    %259 = vmatpush1.bf16.msra.mxu0 0
    %260 = vmatprep.subr.bf16.mxu0 0
    %261 = vmatpush1.bf16.msra.mxu0 0
    %262 = vmatprep.subr.bf16.mxu0 0
    %263 = vmatpush1.bf16.msra.mxu0 0
    %264 = vmatprep.subr.bf16.mxu0 0
    %265 = vmatpush1.bf16.msra.mxu0 0
    %266 = vmatprep.mubr.bf16.mxu0 0
    %267 = vmatmul.mubr.bf16.gmra.mrb[0].mxu0 %v188
    %v268 = vpop.f32.mrb[0].mxu0
    %v269 = vadd.f32 %v229, %v268
    %v270 = vpop.f32.mrb[0].mxu0
    %v271 = vpop.f32.mrb[0].mxu0
    %v272 = vpop.f32.mrb[0].mxu0
    %273 = vdwg.mxu0
    %274 = vst [vmem:[#allocation2] sm:$0xff] %v269
    // Predicated region
    $region14: #{skipgram_forward.1} parent=1 // pred_check
      _
    $region15: #{skipgram_forward.1} parent=1 // pred_check_branch
      %276 = sbr.rel (0) target = $region17
    $region16: #{skipgram_forward.1} parent=1 // pred_region
      %s278 = ssub.s32 128, 128
      %279 = vsyncadd [#allocation3], %s278
      %s281 = sshll.u32 [#allocation2], 4
      %s282 = int_to_ptr.vmem [resolvable:$true] %s281
      %284 = dma.vmem_to_hbm [thread:$0]  %s282, 128, %s3, [#allocation3]
    $region17: #{skipgram_forward.1} parent=1 // pred_fallthru
      _
    // Predicated region
    $region18: #{skipgram_forward.1} parent=1 // pred_check
      _
    $region19: #{skipgram_forward.1} parent=1 // pred_check_branch
      %286 = sbr.rel (0) target = $region21
    $region20: #{skipgram_forward.1} parent=1 // pred_region
      %287 = dma.done [#allocation3], 128
    $region21: #{skipgram_forward.1} parent=1 // pred_fallthru
      _
    %288 = vsyncpa [#allocation3], 1

</llo_original>
